<compile_context>
chip_gen: v7x
topology: tpu7x:2x2x1
jax: 0.10.0
libtpu: 0.0.40
codegen_flags: <defaults>
</compile_context>

<pallas_src>
import jax
import jax.numpy as jnp
import numpy as np
from jax.experimental import pallas as pl
from jax.experimental.pallas import tpu as pltpu


def _pick_batch_tile(B, cap=16):
    """Largest divisor of B that is <= cap, preferring >= 2 grid steps (v7x)."""
    best = 1
    for bt in range(1, min(B, cap) + 1):
        if B % bt == 0 and (B // bt >= 2 or B == 1):
            best = bt
    return best


def _make_selection_matrix(H, W, H2, W2, dtype):
    """(H*W, H2*W2) 0/1 matrix implementing x[..., ::2, ::2] on flattened HW."""
    idx_in = np.arange(H * W)
    h_in, w_in = idx_in // W, idx_in % W
    idx_out = np.arange(H2 * W2)
    h_out, w_out = idx_out // W2, idx_out % W2
    sel = (h_in[:, None] == 2 * h_out[None, :]) & (w_in[:, None] == 2 * w_out[None, :])
    return jnp.asarray(sel.astype(np.float32), dtype=dtype)


def lambda_layer(x, planes):
    """Pallas implementation of the option-A shortcut lambda.

    x: (B, C, H, W)  ->  (B, C + 2*(planes//4), ceil(H/2), ceil(W/2))
    """
    B, C, H, W = x.shape
    pad = planes // 4
    H2 = (H + 1) // 2
    W2 = (W + 1) // 2
    C_out = C + 2 * pad
    HW = H * W
    HW_out = H2 * W2

    Bt = _pick_batch_tile(B)
    grid = (B // Bt,)

    # Contiguous reshape in the wrapper is free: HW goes on the lane axis.
    x2 = x.reshape(B, C, HW)
    sel = _make_selection_matrix(H, W, H2, W2, x.dtype)

    acc_dtype = x.dtype  # 0/1 selection is exact; skip f32 accumulate + downcast

    def kernel(sel_ref, x_ref, o_ref):
        # (Bt, C, HW) . (HW, HW_out) -> (Bt, C, HW_out): one lane-dense MXU pass
        # does both the H and W stride-2 at once.
        y = jax.lax.dot_general(
            x_ref[...], sel_ref[...],
            dimension_numbers=(((2,), (0,)), ((), ())),
            preferred_element_type=acc_dtype,
        )
        if pad > 0:
            zeros = jnp.zeros((Bt, pad, HW_out), o_ref.dtype)
            o_ref[:, pl.ds(0, pad), :] = zeros               # leading zero channels
            o_ref[:, pl.ds(pad + C, pad), :] = zeros         # trailing zero channels
        o_ref[:, pl.ds(pad, C), :] = y.astype(o_ref.dtype)   # subsampled slab

    itemsize = jnp.dtype(x.dtype).itemsize
    cost = pl.CostEstimate(
        flops=2 * B * C * HW * HW_out,
        transcendentals=0,
        bytes_accessed=(B * C * HW + B * C_out * HW_out + HW * HW_out) * itemsize,
    )

    out = pl.pallas_call(
        kernel,
        out_shape=jax.ShapeDtypeStruct((B, C_out, HW_out), x.dtype),
        grid_spec=pltpu.PrefetchScalarGridSpec(
            num_scalar_prefetch=0,
            grid=grid,
            in_specs=[
                # Constant block index -> selection matrix is fetched once and
                # stays resident in VMEM for the whole grid.
                pl.BlockSpec((HW, HW_out), lambda b: (0, 0)),
                pl.BlockSpec((Bt, C, HW), lambda b: (b, 0, 0)),
            ],
            out_specs=pl.BlockSpec((Bt, C_out, HW_out), lambda b: (b, 0, 0)),
        ),
        compiler_params=pltpu.CompilerParams(
            dimension_semantics=("parallel",),
        ),
        cost_estimate=cost,
    )(sel, x2)

    return out.reshape(B, C_out, H2, W2)


def lambda_layer_ref(x, planes):
    """Pure-JAX reference matching the PyTorch lambda exactly."""
    pad = planes // 4
    y = x[:, :, ::2, ::2]
    return jnp.pad(y, ((0, 0), (pad, pad), (0, 0), (0, 0)))


if __name__ == "__main__":
    key = jax.random.PRNGKey(0)
    B, C, H, W = 2, 4, 16, 16
    planes = 2 * C  # typical ResNet expansion -> pad = planes // 4 = 2 per side

    x = jax.random.normal(key, (B, C, H, W), dtype=jnp.float32)

    out = lambda_layer(x, planes)
    out = jax.block_until_ready(out)

    ref = lambda_layer_ref(x, planes)
    assert out.shape == ref.shape == (B, C + 2 * (planes // 4), H // 2, W // 2)
    np.testing.assert_allclose(np.asarray(out), np.asarray(ref), rtol=1e-6, atol=1e-6)

    print("KERNEL_OK")
</pallas_src>

<mosaic_0001>
module attributes {stable_mosaic.version = 11 : i64} {
  func.func @kernel(%arg0: i32, %arg1: memref<256x64xf32, #tpu.memory_space<vmem>>, %arg2: memref<1x4x256xf32, #tpu.memory_space<vmem>>, %arg3: memref<1x8x64xf32, #tpu.memory_space<vmem>>) attributes {dimension_semantics = [#tpu.dimension_semantics<parallel>], iteration_bounds = array<i64: 2>, scalar_prefetch = 0 : i64, scratch_operands = 0 : i64, tpu.core_type = #tpu.core_type<tc>, window_params = [{pipeline_mode = #tpu.pipeline_mode<synchronous>, transform_indices = @transform_0, window_bounds = array<i64: 256, 64>}, {transform_indices = @transform_1, window_bounds = array<i64: 1, 4, 256>}, {transform_indices = @transform_2, window_bounds = array<i64: 1, 8, 64>}]} {
    %c0 = arith.constant 0 : index
    %c0_0 = arith.constant 0 : index
    %c0_1 = arith.constant 0 : index
    %0 = vector.load %arg2[%c0, %c0_0, %c0_1] : memref<1x4x256xf32, #tpu.memory_space<vmem>>, vector<1x4x256xf32>
    %c0_2 = arith.constant 0 : index
    %c0_3 = arith.constant 0 : index
    %1 = vector.load %arg1[%c0_2, %c0_3] : memref<256x64xf32, #tpu.memory_space<vmem>>, vector<256x64xf32>
    %cst = arith.constant dense<0.000000e+00> : vector<1x4x64xf32>
    %2 = tpu.matmul %0, %1, %cst {dimension_numbers = #tpu.dot_dimension_numbers<[2], [0], [0, 1], [1], [0, 0, 0, 1, 1, 1], [], []>} : vector<1x4x256xf32>, vector<256x64xf32>, vector<1x4x64xf32> -> vector<1x4x64xf32>
    %cst_4 = arith.constant 0.000000e+00 : f32
    %3 = vector.broadcast %cst_4 : f32 to vector<1x2x64xf32>
    %c0_5 = arith.constant 0 : index
    %c0_6 = arith.constant 0 : index
    %c0_7 = arith.constant 0 : index
    %4 = vector.load %arg3[%c0_5, %c0_6, %c0_7] : memref<1x8x64xf32, #tpu.memory_space<vmem>>, vector<1x2x64xf32>
    tpu.vector_store %arg3[%c0_5, %c0_6, %c0_7], %3 {strides = array<i32>} : memref<1x8x64xf32, #tpu.memory_space<vmem>>, vector<1x2x64xf32>,
    %c0_8 = arith.constant 0 : index
    %c6 = arith.constant 6 : index
    %c0_9 = arith.constant 0 : index
    %5 = vector.load %arg3[%c0_8, %c6, %c0_9] : memref<1x8x64xf32, #tpu.memory_space<vmem>>, vector<1x2x64xf32>
    tpu.vector_store %arg3[%c0_8, %c6, %c0_9], %3 {strides = array<i32>} : memref<1x8x64xf32, #tpu.memory_space<vmem>>, vector<1x2x64xf32>,
    %c0_10 = arith.constant 0 : index
    %c2 = arith.constant 2 : index
    %c0_11 = arith.constant 0 : index
    %6 = vector.load %arg3[%c0_10, %c2, %c0_11] : memref<1x8x64xf32, #tpu.memory_space<vmem>>, vector<1x4x64xf32>
    tpu.vector_store %arg3[%c0_10, %c2, %c0_11], %2 {strides = array<i32>} : memref<1x8x64xf32, #tpu.memory_space<vmem>>, vector<1x4x64xf32>,
    return
  }
  func.func @transform_0(%arg0: i32) -> (i32, i32) {
    %c0_i32 = arith.constant 0 : i32
    %c0_i32_0 = arith.constant 0 : i32
    %c0_i32_1 = arith.constant 0 : i32
    return %c0_i32, %c0_i32_0 : i32, i32
  }
  func.func @transform_1(%arg0: i32) -> (i32, i32, i32) {
    %c0_i32 = arith.constant 0 : i32
    %c0_i32_0 = arith.constant 0 : i32
    %c0_i32_1 = arith.constant 0 : i32
    return %arg0, %c0_i32, %c0_i32_0 : i32, i32, i32
  }
  func.func @transform_2(%arg0: i32) -> (i32, i32, i32) {
    %c0_i32 = arith.constant 0 : i32
    %c0_i32_0 = arith.constant 0 : i32
    %c0_i32_1 = arith.constant 0 : i32
    return %arg0, %c0_i32, %c0_i32_0 : i32, i32, i32
  }
}

</mosaic_0001>

<llo_original>
// kernel: tpu_custom_call.1
$region0: #{tpu_custom_call.1}
  #allocation0 [shape = 'u32[]', space=smem, size = 0x4, offset = 0x4, fixed_abs, tag = 'smem constant byte address 0x4 - core index']
  #allocation1 [shape = 'u32[144,128]{1,0:T(1,128)}', space=vmem, size = 0x12000, scoped, tag = 'internal scratch']
  %s0 = inlined_call_operand.vmem [shape: f32[256,64], index: 0, kind: input, shape index: {}]
  %s1 = inlined_call_operand.vmem [shape: f32[2,4,256], index: 1, kind: input, shape index: {}]
  %s2 = inlined_call_operand.hbm [shape: f32[2,8,64], index: 2, kind: output, shape index: {}]
  %s3 = sld [smem:[#allocation0]]
  $region41: #{tpu_custom_call.1} parent=0
    _
  %s5 = ssub.s32 1, %s3
  %s6 = scalar_select 0, %s5, %s3
  $region1: #{tpu_custom_call.1} parent=0
    #allocation2 [shape = 'u8[8192]{0}', space=vmem, size = 0x2000, scoped, tag = 'output window, operand 0']
    #allocation3 [shape = 's32[2]{0}', space=sflag, size = 0x8, scoped, tag = 'scoped memory for tpu_custom_call.1']
    %7 = vsyncpa [#allocation3], 0
    %s8 = scalar_lea.sflag [#allocation3], 1
    %9 = vsyncpa %s8, 0
    loop: start=0, step=1, limit=4
    $region2: #{tpu_custom_call.1} parent=1 // loop_pre_header
      _
    $region3: #{tpu_custom_call.1} parent=1 // loop_header
      %s11 = sphi 0, %s15
      %p12 = scmp.ge.s32.totalorder %s11, 4
      %s19 = sphi 0, %s19
      %s21 = sphi 0, %s19
      %s22 = sphi 0, %s21
      %s36 = sphi 0, %s22
      %s42 = sphi 0, %s44
      %s45 = sphi 0, %s42
      %s46 = sphi 0, %s45
      %s62 = sphi 0, %s46
      %s68 = sphi 0, %s70
      %s71 = sphi 0, %s68
      %s72 = sphi 0, %s71
      %s88 = sphi 0, %s72
    $region4: #{tpu_custom_call.1} parent=1 // loop_header_branch
      %14 = sbr.rel (%p12) target = $region8
    $region5: #{tpu_custom_call.1} parent=1 // loop_body
      %s16 = ssub.s32 %s11, 1
      %s17 = ssub.s32 %s11, 2
      %s18 = sadd.s32 %s11, 1
      %s20 = sadd.s32 %s19, 1
      %p23 = scmp.eq.s32.totalorder %s11, 1
      %p24 = scmp.ne.s32.totalorder %s19, %s21
      %p25 = scmp.eq.s32.totalorder %s11, 0
      %p26 = por %p24, %p25
      %p27 = scmp.ne.s32.totalorder %s19, %s21
      %p28 = scmp.eq.s32.totalorder %s16, 1
      %p29 = por %p27, %p28
      %p30 = scmp.ne.s32.totalorder %s21, %s22
      %p31 = scmp.eq.s32.totalorder %s16, 0
      %p32 = por %p30, %p31
      %p33 = scmp.ne.s32.totalorder %s21, %s22
      %p34 = scmp.eq.s32.totalorder %s17, 1
      %p35 = por %p33, %p34
      %p37 = scmp.ne.s32.totalorder %s22, %s36
      %p38 = scmp.eq.s32.totalorder %s17, 0
      %p39 = por %p37, %p38
      %s40 = ssub.s32 %s11, %s18
      %p41 = scmp.eq.s32.totalorder %s40, 0
      %s43 = sadd.s32 %s42, 1
      %s44 = scalar_select %p41, %s42, %s43
      %p47 = pneg %p41
      %p48 = scmp.eq.s32.totalorder %s11, 1
      %p49 = por %p47, %p48
      %p50 = scmp.ne.s32.totalorder %s42, %s45
      %p51 = scmp.eq.s32.totalorder %s11, 0
      %p52 = por %p50, %p51
      %p53 = scmp.ne.s32.totalorder %s42, %s45
      %p54 = scmp.eq.s32.totalorder %s16, 1
      %p55 = por %p53, %p54
      %p56 = scmp.ne.s32.totalorder %s45, %s46
      %p57 = scmp.eq.s32.totalorder %s16, 0
      %p58 = por %p56, %p57
      %p59 = scmp.ne.s32.totalorder %s45, %s46
      %p60 = scmp.eq.s32.totalorder %s17, 1
      %p61 = por %p59, %p60
      %p63 = scmp.ne.s32.totalorder %s46, %s62
      %p64 = scmp.eq.s32.totalorder %s17, 0
      %p65 = por %p63, %p64
      %s66 = ssub.s32 %s11, %s18
      %p67 = scmp.eq.s32.totalorder %s66, 0
      %s69 = sadd.s32 %s68, 1
      %s70 = scalar_select %p67, %s68, %s69
      %p73 = pneg %p67
      %p74 = scmp.eq.s32.totalorder %s11, 1
      %p75 = por %p73, %p74
      %p76 = scmp.ne.s32.totalorder %s68, %s71
      %p77 = scmp.eq.s32.totalorder %s11, 0
      %p78 = por %p76, %p77
      %p79 = scmp.ne.s32.totalorder %s68, %s71
      %p80 = scmp.eq.s32.totalorder %s16, 1
      %p81 = por %p79, %p80
      %p82 = scmp.ne.s32.totalorder %s71, %s72
      %p83 = scmp.eq.s32.totalorder %s16, 0
      %p84 = por %p82, %p83
      %p85 = scmp.ne.s32.totalorder %s71, %s72
      %p86 = scmp.eq.s32.totalorder %s17, 1
      %p87 = por %p85, %p86
      %p89 = scmp.ne.s32.totalorder %s72, %s88
      %p90 = scmp.eq.s32.totalorder %s17, 0
      %p91 = por %p89, %p90
      %p92 = scmp.le.s32.totalorder 1, %s11
      %p93 = scmp.lt.s32.totalorder %s11, 3
      %p94 = pnand %p92, %p93
      %p95 = pneg %p94
      // Predicated region
      $region9: #{tpu_custom_call.1} parent=5 // pred_check
        _
      $region10: #{tpu_custom_call.1} parent=5 // pred_check_branch
        %97 = sbr.rel (%p94) target = $region12
      $region11: #{tpu_custom_call.1} parent=5 // pred_region
        %s98 = ssub.s32 %s11, 1
        // Predicated region
        $region13: #{tpu_custom_call.1} parent=11 // pred_check
          %p99 = pneg %p32
        $region14: #{tpu_custom_call.1} parent=11 // pred_check_branch
          %101 = sbr.rel (%p99) target = $region16
        $region15: #{tpu_custom_call.1} parent=11 // pred_region
          _
        $region16: #{tpu_custom_call.1} parent=11 // pred_fallthru
          _
      $region12: #{tpu_custom_call.1} parent=5 // pred_fallthru
        _
      %p102 = scmp.lt.s32.totalorder %s11, 2
      // Predicated region
      $region17: #{tpu_custom_call.1} parent=5 // pred_check
        %p103 = pneg %p102
      $region18: #{tpu_custom_call.1} parent=5 // pred_check_branch
        %105 = sbr.rel (%p103) target = $region20
      $region19: #{tpu_custom_call.1} parent=5 // pred_region
        // Predicated region
        $region21: #{tpu_custom_call.1} parent=19 // pred_check
          %p106 = pneg %p52
        $region22: #{tpu_custom_call.1} parent=19 // pred_check_branch
          %108 = sbr.rel (%p106) target = $region24
        $region23: #{tpu_custom_call.1} parent=19 // pred_region
          %p109 = scmp.lt.s32.totalorder %s11, 1
          %s110 = scalar_select %p109, %s11, 1
          %s111 = smul.addr %s110, 2
          %s112 = smul.addr %s111, 4
          %s113 = scalar_lea.vmem %s1, %s112
        $region24: #{tpu_custom_call.1} parent=19 // pred_fallthru
          _
      $region20: #{tpu_custom_call.1} parent=5 // pred_fallthru
        _
      %p114 = scmp.le.s32.totalorder 1, %s11
      %p115 = scmp.lt.s32.totalorder %s11, 3
      %p116 = pnand %p114, %p115
      %p117 = pneg %p116
      // Predicated region
      $region25: #{tpu_custom_call.1} parent=5 // pred_check
        _
      $region26: #{tpu_custom_call.1} parent=5 // pred_check_branch
        %119 = sbr.rel (%p116) target = $region28
      $region27: #{tpu_custom_call.1} parent=5 // pred_region
        %s120 = ssub.s32 %s11, 1
        %p121 = pneg %p32
        %p122 = pneg %p29
        %p123 = scmp.lt.s32.totalorder %s16, 1
        %s124 = scalar_select %p123, %s16, 1
        %s125 = smul.addr %s124, 2
        %s126 = smul.addr %s125, 4
        %s127 = scalar_lea.vmem %s1, %s126
        %p128 = pneg %p58
        %p129 = pneg %p55
        %p130 = pneg %p84
        %p131 = pneg %p81
        %s132 = sand.u32 %s71, 1
        %s133 = scalar_lea.sflag [#allocation3], %s132
        %s134 = sand.u32 %s71, 1
        %s135 = smul.addr %s134, 8
        %s136 = scalar_lea.vmem [#allocation2], %s135
        %p137 = scmp.lt.s32.totalorder %s16, 1
        %s138 = scalar_select %p137, %s16, 1
        %s139 = smul.addr %s138, 2
        %s140 = smul.addr %s139, 4
        %s141 = scalar_lea.vmem %s1, %s140
        %v142 = vld [vmem:[%s141] sm:$0xff]
        %v143 = vld [vmem:[%s0] sm:$0xff]
        %v144 = vld [vmem:[%s0 + $0x8] sm:$0xff]
        %v145 = vld [vmem:[%s0 + $0x10] sm:$0xff]
        %v146 = vld [vmem:[%s0 + $0x18] sm:$0xff]
        %v147 = vld [vmem:[%s0 + $0x20] sm:$0xff]
        %v148 = vld [vmem:[%s0 + $0x28] sm:$0xff]
        %v149 = vld [vmem:[%s0 + $0x30] sm:$0xff]
        %v150 = vld [vmem:[%s0 + $0x38] sm:$0xff]
        %v151 = vld [vmem:[%s0 + $0x40] sm:$0xff]
        %v152 = vld [vmem:[%s0 + $0x48] sm:$0xff]
        %v153 = vld [vmem:[%s0 + $0x50] sm:$0xff]
        %v154 = vld [vmem:[%s0 + $0x58] sm:$0xff]
        %v155 = vld [vmem:[%s0 + $0x60] sm:$0xff]
        %v156 = vld [vmem:[%s0 + $0x68] sm:$0xff]
        %v157 = vld [vmem:[%s0 + $0x70] sm:$0xff]
        %v158 = vld [vmem:[%s0 + $0x78] sm:$0xff]
        %v159 = vld [vmem:[%s0 + $0x80] sm:$0xff]
        %v160 = vld [vmem:[%s0 + $0x88] sm:$0xff]
        %v161 = vld [vmem:[%s0 + $0x90] sm:$0xff]
        %v162 = vld [vmem:[%s0 + $0x98] sm:$0xff]
        %v163 = vld [vmem:[%s0 + $0xa0] sm:$0xff]
        %v164 = vld [vmem:[%s0 + $0xa8] sm:$0xff]
        %v165 = vld [vmem:[%s0 + $0xb0] sm:$0xff]
        %v166 = vld [vmem:[%s0 + $0xb8] sm:$0xff]
        %v167 = vld [vmem:[%s0 + $0xc0] sm:$0xff]
        %v168 = vld [vmem:[%s0 + $0xc8] sm:$0xff]
        %v169 = vld [vmem:[%s0 + $0xd0] sm:$0xff]
        %v170 = vld [vmem:[%s0 + $0xd8] sm:$0xff]
        %v171 = vld [vmem:[%s0 + $0xe0] sm:$0xff]
        %v172 = vld [vmem:[%s0 + $0xe8] sm:$0xff]
        %v173 = vld [vmem:[%s0 + $0xf0] sm:$0xff]
        %v174 = vld [vmem:[%s0 + $0xf8] sm:$0xff]
        %v176 = vcombine.high %v142, %v142
        %178 = vmatprep.subr.mxu0 0.0
        %179 = vmatpush1.msra.mxu0 %v143
        %180 = vmatprep.subr.mxu0 0.0
        %181 = vmatpush1.msra.mxu0 %v144
        %182 = vmatprep.subr.mxu0 0.0
        %183 = vmatpush1.msra.mxu0 %v145
        %184 = vmatprep.subr.mxu0 0.0
        %185 = vmatpush1.msra.mxu0 %v146
        %186 = vmatprep.subr.mxu0 0.0
        %187 = vmatpush1.msra.mxu0 %v147
        %188 = vmatprep.subr.mxu0 0.0
        %189 = vmatpush1.msra.mxu0 %v148
        %190 = vmatprep.subr.mxu0 0.0
        %191 = vmatpush1.msra.mxu0 %v149
        %192 = vmatprep.subr.mxu0 0.0
        %193 = vmatpush1.msra.mxu0 %v150
        %194 = vmatprep.subr.mxu0 0.0
        %195 = vmatpush1.msra.mxu0 %v151
        %196 = vmatprep.subr.mxu0 0.0
        %197 = vmatpush1.msra.mxu0 %v152
        %198 = vmatprep.subr.mxu0 0.0
        %199 = vmatpush1.msra.mxu0 %v153
        %200 = vmatprep.subr.mxu0 0.0
        %201 = vmatpush1.msra.mxu0 %v154
        %202 = vmatprep.subr.mxu0 0.0
        %203 = vmatpush1.msra.mxu0 %v155
        %204 = vmatprep.subr.mxu0 0.0
        %205 = vmatpush1.msra.mxu0 %v156
        %206 = vmatprep.subr.mxu0 0.0
        %207 = vmatpush1.msra.mxu0 %v157
        %208 = vmatprep.subr.mxu0 0.0
        %209 = vmatpush1.msra.mxu0 %v158
        %210 = vmatprep.subr.mxu0 0.0
        %211 = vmatpush1.msra.mxu0 %v159
        %212 = vmatprep.subr.mxu0 0.0
        %213 = vmatpush1.msra.mxu0 %v160
        %214 = vmatprep.subr.mxu0 0.0
        %215 = vmatpush1.msra.mxu0 %v161
        %216 = vmatprep.subr.mxu0 0.0
        %217 = vmatpush1.msra.mxu0 %v162
        %218 = vmatprep.subr.mxu0 0.0
        %219 = vmatpush1.msra.mxu0 %v163
        %220 = vmatprep.subr.mxu0 0.0
        %221 = vmatpush1.msra.mxu0 %v164
        %222 = vmatprep.subr.mxu0 0.0
        %223 = vmatpush1.msra.mxu0 %v165
        %224 = vmatprep.subr.mxu0 0.0
        %225 = vmatpush1.msra.mxu0 %v166
        %226 = vmatprep.subr.mxu0 0.0
        %227 = vmatpush1.msra.mxu0 %v167
        %228 = vmatprep.subr.mxu0 0.0
        %229 = vmatpush1.msra.mxu0 %v168
        %230 = vmatprep.subr.mxu0 0.0
        %231 = vmatpush1.msra.mxu0 %v169
        %232 = vmatprep.subr.mxu0 0.0
        %233 = vmatpush1.msra.mxu0 %v170
        %234 = vmatprep.subr.mxu0 0.0
        %235 = vmatpush1.msra.mxu0 %v171
        %236 = vmatprep.subr.mxu0 0.0
        %237 = vmatpush1.msra.mxu0 %v172
        %238 = vmatprep.subr.mxu0 0.0
        %239 = vmatpush1.msra.mxu0 %v173
        %240 = vmatprep.subr.mxu0 0.0
        %241 = vmatpush1.msra.mxu0 %v174
        %242 = vmatprep.mubr.f32.mxu0 %v176
        %243 = vmatmul.mubr.f32.gmra.mrb[0].mxu0 %v142
        %v244 = vpop.f32.mrb[0].mxu0
        %v245 = vadd.f32 0.0, %v244
        %v246 = vpop.f32.mrb[0].mxu0
        %247 = vdwg.mxu0
        %vm248 = vcmask 517120
        %249 = vst.msk [vmem:[%s136] sm:$0x3] %vm248, 0.0
        %250 = vst.msk [vmem:[%s136 + $0x6] sm:$0x3] %vm248, 0.0
        %vm251 = vcmask 519168
        %252 = vst.msk [vmem:[%s136 + $0x2] sm:$0xf] %vm251, %v245
        %s253 = sand.u32 %s71, 1
        %s254 = scalar_lea.sflag [#allocation3], %s253
        %s255 = sand.u32 %s71, 1
        %s256 = smul.addr %s255, 8
        %s257 = scalar_lea.vmem [#allocation2], %s256
        // Predicated region
        $region29: #{tpu_custom_call.1} parent=27 // pred_check
          %p258 = pneg %p81
        $region30: #{tpu_custom_call.1} parent=27 // pred_check_branch
          %260 = sbr.rel (%p258) target = $region32
        $region31: #{tpu_custom_call.1} parent=27 // pred_region
          %s262 = ssub.s32 128, 128
          %263 = vsyncadd %s254, %s262
          %s264 = smul.addr %s16, 128
          %s265 = scalar_lea.hbm %s2, %s264
          %s267 = sshll.u32 %s257, 4
          %s268 = int_to_ptr.vmem [resolvable:$true] %s267
          %270 = dma.vmem_to_hbm [thread:$0]  %s268, 128, %s265, %s254
        $region32: #{tpu_custom_call.1} parent=27 // pred_fallthru
          _
      $region28: #{tpu_custom_call.1} parent=5 // pred_fallthru
        _
      %p271 = scmp.le.s32.totalorder 2, %s11
      // Predicated region
      $region33: #{tpu_custom_call.1} parent=5 // pred_check
        %p272 = pneg %p271
      $region34: #{tpu_custom_call.1} parent=5 // pred_check_branch
        %274 = sbr.rel (%p272) target = $region36
      $region35: #{tpu_custom_call.1} parent=5 // pred_region
        %s275 = ssub.s32 %s11, 2
        // Predicated region
        $region37: #{tpu_custom_call.1} parent=35 // pred_check
          %p276 = pneg %p87
        $region38: #{tpu_custom_call.1} parent=35 // pred_check_branch
          %278 = sbr.rel (%p276) target = $region40
        $region39: #{tpu_custom_call.1} parent=35 // pred_region
          %s279 = sand.u32 %s72, 1
          %s280 = scalar_lea.sflag [#allocation3], %s279
          %s281 = sand.u32 %s72, 1
          %s282 = smul.addr %s281, 8
          %s283 = scalar_lea.vmem [#allocation2], %s282
          %284 = dma.done %s280, 128
        $region40: #{tpu_custom_call.1} parent=35 // pred_fallthru
          _
      $region36: #{tpu_custom_call.1} parent=5 // pred_fallthru
        _
    $region6: #{tpu_custom_call.1} parent=1 // loop_footer
      %s15 = sadd.s32 1, %s11
    $region7: #{tpu_custom_call.1} parent=1 // loop_footer_branch
      %10 = sbr.rel target = $region3
    $region8: #{tpu_custom_call.1} parent=1 // loop_exit
      _
    %285 = vsyncpa [#allocation3], 1
    %s286 = scalar_lea.sflag [#allocation3], 1
    %287 = vsyncpa %s286, 1

</llo_original>
